<compile_context>
chip_gen: v6e
topology: v6e:2x2x1
jax: 0.10.0
libtpu: 0.0.40
codegen_flags: <defaults>
</compile_context>

<pallas_src>
import functools

import jax
import jax.numpy as jnp
from jax.experimental import pallas as pl
from jax.experimental.pallas import tpu as pltpu


# ----------------------------------------------------------------------------
# Fused ResBlock1D kernel: one batch-group (B_tile rows flattened on lanes)
# ----------------------------------------------------------------------------

def resblock1d_kernel(x_ref, w1m_ref, w1c_ref, w1p_ref,
                      w2m_ref, w2c_ref, w2p_ref, sc_ref,
                      *rest, L, Cout, skip_mode):
    """skip_mode: 0 = identity skip, 1 = separate 1x1 skip matmul,
    2 = skip folded into the conv1 center-tap matmul (w1c has 2*Cout rows)."""
    if skip_mode == 1:
        wskip_ref, o_ref = rest
    else:
        (o_ref,) = rest

    Nt = x_ref.shape[1]                 # B_tile * L lanes
    x = x_ref[...]                      # (Cin, Nt) f32

    # packed per-channel folded BN scale/shift (+ skip bias): one (Cout, 8) block.
    sc = sc_ref[...]
    s1, sh1 = sc[:, 0:1], sc[:, 1:2]
    s2, sh2 = sc[:, 2:3], sc[:, 3:4]
    bskip = sc[:, 4:5]

    # Row-local column index: built ONCE per grid step, reused by both convs.
    # Masks reproduce zero padding at every sequence boundary of the flattened slab.
    col = jax.lax.broadcasted_iota(jnp.int32, (1, Nt), 1) % L
    has_left = col >= 1
    has_right = col <= L - 2

    def shifted_planes(v):
        # v: (C, Nt) f32 -> bf16 planes (v[:, i-1], v[:, i], v[:, i+1]), zero halo.
        # Shifts via XLU roll (separate VLIW slot); mask/select stays in f32.
        v_m1 = jnp.where(has_left, pltpu.roll(v, 1, 1), 0.0)
        v_p1 = jnp.where(has_right, pltpu.roll(v, Nt - 1, 1), 0.0)
        return (v_m1.astype(jnp.bfloat16), v.astype(jnp.bfloat16),
                v_p1.astype(jnp.bfloat16))

    xm, xc, xp = shifted_planes(x)

    # --- conv1 (k=3, pad=1) [+ folded 1x1 skip]: three bf16 MXU dots, f32 acc.
    yc = jnp.dot(w1c_ref[...], xc, preferred_element_type=jnp.float32)
    side = (jnp.dot(w1m_ref[...], xm, preferred_element_type=jnp.float32)
            + jnp.dot(w1p_ref[...], xp, preferred_element_type=jnp.float32))

    if skip_mode == 2:
        h_pre = yc[:Cout] + side            # sublane-aligned slice (Cout % 8 == 0)
        res = yc[Cout:] + bskip
    else:
        h_pre = yc + side
        if skip_mode == 1:
            res = jnp.dot(wskip_ref[...], xc,
                          preferred_element_type=jnp.float32) + bskip
        else:
            res = x                          # identity skip (Cin == Cout)

    # folded BN1 + ReLU (f32 element-wise).
    h = jnp.maximum(h_pre * s1 + sh1, 0.0)   # (Cout, Nt)

    # --- conv2 (k=3, pad=1): h never leaves VMEM/vregs; three bf16 dots again.
    hm, hc, hp = shifted_planes(h)
    y = (jnp.dot(w2m_ref[...], hm, preferred_element_type=jnp.float32)
         + jnp.dot(w2c_ref[...], hc, preferred_element_type=jnp.float32)
         + jnp.dot(w2p_ref[...], hp, preferred_element_type=jnp.float32))

    # folded BN2 + residual add + final ReLU.
    o_ref[...] = jnp.maximum(y * s2 + sh2 + res, 0.0).astype(o_ref.dtype)


# ----------------------------------------------------------------------------
# Wrapper
# ----------------------------------------------------------------------------

def _choose_batch_tile(B, Cin, Cout, L, budget_bytes=16 << 20):
    """Rows per grid step: amortize ~0.35us/step overhead, stay inside a VMEM
    budget, and keep >= 2 grid steps when B >= 2 (v7x has 2 TensorCores)."""
    per_row = L * (Cin * 10 + Cout * 34 + 8)          # rough live f32+bf16 bytes
    bt = max(1, min(B, budget_bytes // max(per_row, 1)))
    if B >= 2:
        bt = min(bt, max(1, B // 2))
    while B % bt:
        bt -= 1
    if (bt * L) % 128 and bt != B:
        bt = B          # blocks must be lane-aligned (x128) or equal full dims
    return bt


def _vmem_estimate(bt, Cin, Cout, L):
    nt = bt * L
    f32, bf16 = 4, 2
    return nt * (2 * f32 * Cin          # x block (double-buffered)
                 + 2 * f32 * Cout       # out block (double-buffered)
                 + 3 * bf16 * Cin       # bf16 x planes
                 + 2 * f32 * Cout       # stacked conv1+skip accumulator
                 + 3 * f32 * Cout       # side / h / res
                 + 3 * bf16 * Cout      # bf16 h planes
                 + 2 * f32) + (1 << 20)


def resblock1d(x_ncw, kp):
    """x_ncw: (B, Cin, L) — same NCW layout the PyTorch module receives."""
    B, Cin, L = x_ncw.shape
    Cout = kp["w2c"].shape[0]
    skip_mode = kp["skip_mode"]
    if skip_mode == 0:
        assert Cin == Cout, "identity skip requires in_ch == out_ch"

    # Lane-dense layout: flatten batch into the lane axis (matmul N = B_tile*L).
    x_flat = jnp.transpose(x_ncw, (1, 0, 2)).reshape(Cin, B * L)

    bt = _choose_batch_tile(B, Cin, Cout, L)
    nt = bt * L
    grid = (B // bt,)

    kern = functools.partial(resblock1d_kernel, L=L, Cout=Cout,
                             skip_mode=skip_mode)

    def w_spec(arr):
        return pl.BlockSpec(arr.shape, lambda i: (0, 0))

    in_arrays = [x_flat, kp["w1m"], kp["w1c"], kp["w1p"],
                 kp["w2m"], kp["w2c"], kp["w2p"], kp["scales"]]
    in_specs = [pl.BlockSpec((Cin, nt), lambda i: (0, i)),
                w_spec(kp["w1m"]), w_spec(kp["w1c"]), w_spec(kp["w1p"]),
                w_spec(kp["w2m"]), w_spec(kp["w2c"]), w_spec(kp["w2p"]),
                w_spec(kp["scales"])]
    if skip_mode == 1:
        in_arrays.append(kp["wskip"])
        in_specs.append(w_spec(kp["wskip"]))

    cp_kwargs = dict(dimension_semantics=("parallel",))
    est = _vmem_estimate(bt, Cin, Cout, L)
    if est > (16 << 20):
        cp_kwargs["vmem_limit_bytes"] = int(min(est * 1.5, 64 << 20))

    out_flat = pl.pallas_call(
        kern,
        out_shape=jax.ShapeDtypeStruct((Cout, B * L), x_ncw.dtype),
        grid=grid,
        in_specs=in_specs,
        out_specs=pl.BlockSpec((Cout, nt), lambda i: (0, i)),
        compiler_params=pltpu.CompilerParams(**cp_kwargs),
    )(*in_arrays)

    # layout plumbing back to NCW (pure reshape/transpose, handled by XLA).
    return jnp.transpose(out_flat.reshape(Cout, B, L), (1, 0, 2))


# ----------------------------------------------------------------------------
# Parameters (PyTorch-style) + inference-mode BN folding into kernel layout
# ----------------------------------------------------------------------------

def init_raw_params(key, in_ch, out_ch):
    keys = iter(jax.random.split(key, 16))

    def nrm(shape, scale=0.1):
        return (scale * jax.random.normal(next(keys), shape)).astype(jnp.float32)

    p = dict(
        conv1_w=nrm((out_ch, in_ch, 3)), conv1_b=nrm((out_ch,)),
        bn1_gamma=1.0 + nrm((out_ch,)), bn1_beta=nrm((out_ch,)),
        bn1_mean=nrm((out_ch,)), bn1_var=1.0 + jnp.abs(nrm((out_ch,))),
        conv2_w=nrm((out_ch, out_ch, 3)), conv2_b=nrm((out_ch,)),
        bn2_gamma=1.0 + nrm((out_ch,)), bn2_beta=nrm((out_ch,)),
        bn2_mean=nrm((out_ch,)), bn2_var=1.0 + jnp.abs(nrm((out_ch,))),
    )
    if in_ch != out_ch:
        p["skip_w"] = nrm((out_ch, in_ch, 1))
        p["skip_b"] = nrm((out_ch,))
    return p


def fold_params(p, eps=1e-5):
    """Fold inference-mode BN (+ conv bias) into per-channel scale/shift, pack
    them into one (Cout, 8) array, split conv taps, cast weights to bf16."""
    def fold(gamma, beta, mean, var, conv_b):
        s = gamma / jnp.sqrt(var + eps)
        return s, beta + (conv_b - mean) * s

    out_ch, in_ch, _ = p["conv1_w"].shape
    s1, sh1 = fold(p["bn1_gamma"], p["bn1_beta"], p["bn1_mean"], p["bn1_var"],
                   p["conv1_b"])
    s2, sh2 = fold(p["bn2_gamma"], p["bn2_beta"], p["bn2_mean"], p["bn2_var"],
                   p["conv2_b"])
    has_skip = "skip_w" in p
    bskip = p["skip_b"] if has_skip else jnp.zeros((out_ch,), jnp.float32)
    zeros = jnp.zeros((out_ch,), jnp.float32)
    scales = jnp.stack([s1, sh1, s2, sh2, bskip, zeros, zeros, zeros],
                       axis=1).astype(jnp.float32)

    bf16 = jnp.bfloat16
    w1, w2 = p["conv1_w"], p["conv2_w"]          # (Cout, Cin/Cout, 3), taps k=0,1,2
    kp = dict(
        w1m=w1[:, :, 0].astype(bf16), w1p=w1[:, :, 2].astype(bf16),
        w2m=w2[:, :, 0].astype(bf16), w2c=w2[:, :, 1].astype(bf16),
        w2p=w2[:, :, 2].astype(bf16),
        scales=scales,
    )
    if has_skip and out_ch % 8 == 0:
        # Fold the 1x1 skip into the conv1 center-tap matmul (stacked M rows).
        kp["w1c"] = jnp.concatenate([w1[:, :, 1], p["skip_w"][:, :, 0]],
                                    axis=0).astype(bf16)
        kp["skip_mode"] = 2
    else:
        kp["w1c"] = w1[:, :, 1].astype(bf16)
        if has_skip:
            kp["wskip"] = p["skip_w"][:, :, 0].astype(bf16)
            kp["skip_mode"] = 1
        else:
            kp["skip_mode"] = 0
    return kp


# ----------------------------------------------------------------------------
# Pure-JAX reference (same inference-mode semantics as the PyTorch module)
# ----------------------------------------------------------------------------

def ref_resblock1d(x, p, eps=1e-5):
    B, C, L = x.shape

    def conv1d_k3(v, w, b):
        vp = jnp.pad(v, ((0, 0), (0, 0), (1, 1)))
        out = sum(jnp.einsum("oc,bcl->bol", w[:, :, k], vp[:, :, k:k + L])
                  for k in range(3))
        return out + b[None, :, None]

    def bn(v, gamma, beta, mean, var):
        s = gamma / jnp.sqrt(var + eps)
        return (v - mean[None, :, None]) * s[None, :, None] + beta[None, :, None]

    res = x
    if "skip_w" in p:
        res = jnp.einsum("oc,bcl->bol", p["skip_w"][:, :, 0], x) \
            + p["skip_b"][None, :, None]
    h = jax.nn.relu(bn(conv1d_k3(x, p["conv1_w"], p["conv1_b"]),
                       p["bn1_gamma"], p["bn1_beta"], p["bn1_mean"], p["bn1_var"]))
    out = bn(conv1d_k3(h, p["conv2_w"], p["conv2_b"]),
             p["bn2_gamma"], p["bn2_beta"], p["bn2_mean"], p["bn2_var"])
    return jax.nn.relu(out + res)


# ----------------------------------------------------------------------------

if __name__ == "__main__":
    key = jax.random.PRNGKey(0)

    def run_case(key, B, Cin, Cout, L):
        kx, kparams = jax.random.split(key)
        x = jax.random.normal(kx, (B, Cin, L), dtype=jnp.float32)
        raw = init_raw_params(kparams, Cin, Cout)
        folded = fold_params(raw)
        y = jax.jit(lambda inp: resblock1d(inp, folded))(x)
        jax.block_until_ready(y)
        assert y.shape == (B, Cout, L), y.shape
        y_ref = ref_resblock1d(x, raw)
        err = float(jnp.max(jnp.abs(y - y_ref)))
        # bf16 MXU operands -> slightly looser tolerance than pure-f32.
        assert jnp.allclose(y, y_ref, rtol=2e-2, atol=2e-2), err
        return err

    k1, k2 = jax.random.split(key)
    run_case(k1, B=2, Cin=4, Cout=16, L=256)    # 1x1-skip (folded) path
    run_case(k2, B=2, Cin=16, Cout=16, L=128)   # identity-skip path

    print("KERNEL_OK")
</pallas_src>

<mosaic_0001>
module attributes {stable_mosaic.version = 11 : i64} {
  func.func @resblock1d_kernel(%arg0: i32, %arg1: memref<4x256xf32, #tpu.memory_space<vmem>>, %arg2: memref<16x4xbf16, #tpu.memory_space<vmem>>, %arg3: memref<32x4xbf16, #tpu.memory_space<vmem>>, %arg4: memref<16x4xbf16, #tpu.memory_space<vmem>>, %arg5: memref<16x16xbf16, #tpu.memory_space<vmem>>, %arg6: memref<16x16xbf16, #tpu.memory_space<vmem>>, %arg7: memref<16x16xbf16, #tpu.memory_space<vmem>>, %arg8: memref<16x8xf32, #tpu.memory_space<vmem>>, %arg9: memref<16x256xf32, #tpu.memory_space<vmem>>) attributes {dimension_semantics = [#tpu.dimension_semantics<parallel>], iteration_bounds = array<i64: 2>, scalar_prefetch = 0 : i64, scratch_operands = 0 : i64, tpu.core_type = #tpu.core_type<tc>, window_params = [{transform_indices = @transform_0, window_bounds = array<i64: 4, 256>}, {pipeline_mode = #tpu.pipeline_mode<synchronous>, transform_indices = @transform_1, window_bounds = array<i64: 16, 4>}, {pipeline_mode = #tpu.pipeline_mode<synchronous>, transform_indices = @transform_2, window_bounds = array<i64: 32, 4>}, {pipeline_mode = #tpu.pipeline_mode<synchronous>, transform_indices = @transform_3, window_bounds = array<i64: 16, 4>}, {pipeline_mode = #tpu.pipeline_mode<synchronous>, transform_indices = @transform_4, window_bounds = array<i64: 16, 16>}, {pipeline_mode = #tpu.pipeline_mode<synchronous>, transform_indices = @transform_5, window_bounds = array<i64: 16, 16>}, {pipeline_mode = #tpu.pipeline_mode<synchronous>, transform_indices = @transform_6, window_bounds = array<i64: 16, 16>}, {pipeline_mode = #tpu.pipeline_mode<synchronous>, transform_indices = @transform_7, window_bounds = array<i64: 16, 8>}, {transform_indices = @transform_8, window_bounds = array<i64: 16, 256>}]} {
    %c0 = arith.constant 0 : index
    %c0_0 = arith.constant 0 : index
    %0 = vector.load %arg1[%c0, %c0_0] : memref<4x256xf32, #tpu.memory_space<vmem>>, vector<4x256xf32>
    %c0_1 = arith.constant 0 : index
    %c0_2 = arith.constant 0 : index
    %1 = vector.load %arg8[%c0_1, %c0_2] : memref<16x8xf32, #tpu.memory_space<vmem>>, vector<16x8xf32>
    %2 = vector.extract_strided_slice %1 {offsets = [0, 0], sizes = [16, 1], strides = [1, 1]} : vector<16x8xf32> to vector<16x1xf32>
    %3 = vector.extract_strided_slice %1 {offsets = [0, 1], sizes = [16, 1], strides = [1, 1]} : vector<16x8xf32> to vector<16x1xf32>
    %4 = vector.extract_strided_slice %1 {offsets = [0, 2], sizes = [16, 1], strides = [1, 1]} : vector<16x8xf32> to vector<16x1xf32>
    %5 = vector.extract_strided_slice %1 {offsets = [0, 3], sizes = [16, 1], strides = [1, 1]} : vector<16x8xf32> to vector<16x1xf32>
    %6 = vector.extract_strided_slice %1 {offsets = [0, 4], sizes = [16, 1], strides = [1, 1]} : vector<16x8xf32> to vector<16x1xf32>
    %7 = tpu.iota {dimensions = array<i32: 1>} : vector<1x256xi32>
    %c256_i32 = arith.constant 256 : i32
    %c0_i32 = arith.constant 0 : i32
    %8 = arith.cmpi eq, %c256_i32, %c0_i32 : i32
    %c1_i32 = arith.constant 1 : i32
    %9 = arith.select %8, %c1_i32, %c256_i32 : i32
    %10 = vector.broadcast %9 : i32 to vector<1x256xi32>
    %11 = arith.remsi %7, %10 : vector<1x256xi32>
    %c0_i32_3 = arith.constant 0 : i32
    %12 = vector.broadcast %c0_i32_3 : i32 to vector<1x256xi32>
    %13 = arith.cmpi ne, %11, %12 : vector<1x256xi32>
    %c0_i32_4 = arith.constant 0 : i32
    %14 = vector.broadcast %c0_i32_4 : i32 to vector<1x256xi32>
    %15 = arith.cmpi slt, %11, %14 : vector<1x256xi32>
    %c0_i32_5 = arith.constant 0 : i32
    %16 = arith.cmpi slt, %9, %c0_i32_5 : i32
    %17 = vector.broadcast %16 : i1 to vector<1x256xi1>
    %18 = vector.broadcast %17 : vector<1x256xi1> to vector<1x256xi1>
    %19 = arith.xori %15, %18 : vector<1x256xi1>
    %20 = arith.andi %19, %13 : vector<1x256xi1>
    %21 = vector.broadcast %9 : i32 to vector<1x256xi32>
    %22 = arith.addi %11, %21 : vector<1x256xi32>
    %23 = arith.select %20, %22, %11 : vector<1x256xi1>, vector<1x256xi32>
    %c1_i32_6 = arith.constant 1 : i32
    %24 = vector.broadcast %c1_i32_6 : i32 to vector<1x256xi32>
    %25 = arith.cmpi sge, %23, %24 : vector<1x256xi32>
    %c254_i32 = arith.constant 254 : i32
    %26 = vector.broadcast %c254_i32 : i32 to vector<1x256xi32>
    %27 = arith.cmpi sle, %23, %26 : vector<1x256xi32>
    %c1_i32_7 = arith.constant 1 : i32
    %28 = tpu.dynamic_rotate %0 by %c1_i32_7 dim 1 : vector<4x256xf32>, i32 -> vector<4x256xf32>
    %cst = arith.constant 0.000000e+00 : f32
    %29 = vector.shape_cast %25 : vector<1x256xi1> to vector<1x256xi1>
    %30 = vector.broadcast %29 : vector<1x256xi1> to vector<4x256xi1>
    %31 = vector.broadcast %cst : f32 to vector<4x256xf32>
    %32 = arith.select %30, %28, %31 : vector<4x256xi1>, vector<4x256xf32>
    %c255_i32 = arith.constant 255 : i32
    %33 = tpu.dynamic_rotate %0 by %c255_i32 dim 1 : vector<4x256xf32>, i32 -> vector<4x256xf32>
    %cst_8 = arith.constant 0.000000e+00 : f32
    %34 = vector.shape_cast %27 : vector<1x256xi1> to vector<1x256xi1>
    %35 = vector.broadcast %34 : vector<1x256xi1> to vector<4x256xi1>
    %36 = vector.broadcast %cst_8 : f32 to vector<4x256xf32>
    %37 = arith.select %35, %33, %36 : vector<4x256xi1>, vector<4x256xf32>
    %38 = arith.truncf %32 : vector<4x256xf32> to vector<4x256xbf16>
    %39 = arith.truncf %0 : vector<4x256xf32> to vector<4x256xbf16>
    %40 = arith.truncf %37 : vector<4x256xf32> to vector<4x256xbf16>
    %c0_9 = arith.constant 0 : index
    %c0_10 = arith.constant 0 : index
    %41 = vector.load %arg3[%c0_9, %c0_10] : memref<32x4xbf16, #tpu.memory_space<vmem>>, vector<32x4xbf16>
    %cst_11 = arith.constant dense<0.000000e+00> : vector<32x256xf32>
    %42 = tpu.matmul %41, %39, %cst_11 {dimension_numbers = #tpu.dot_dimension_numbers<[1], [0], [0], [1], [0, 0, 1, 1], [], []>} : vector<32x4xbf16>, vector<4x256xbf16>, vector<32x256xf32> -> vector<32x256xf32>
    %c0_12 = arith.constant 0 : index
    %c0_13 = arith.constant 0 : index
    %43 = vector.load %arg2[%c0_12, %c0_13] : memref<16x4xbf16, #tpu.memory_space<vmem>>, vector<16x4xbf16>
    %cst_14 = arith.constant dense<0.000000e+00> : vector<16x256xf32>
    %44 = tpu.matmul %43, %38, %cst_14 {dimension_numbers = #tpu.dot_dimension_numbers<[1], [0], [0], [1], [0, 0, 1, 1], [], []>} : vector<16x4xbf16>, vector<4x256xbf16>, vector<16x256xf32> -> vector<16x256xf32>
    %c0_15 = arith.constant 0 : index
    %c0_16 = arith.constant 0 : index
    %45 = vector.load %arg4[%c0_15, %c0_16] : memref<16x4xbf16, #tpu.memory_space<vmem>>, vector<16x4xbf16>
    %cst_17 = arith.constant dense<0.000000e+00> : vector<16x256xf32>
    %46 = tpu.matmul %45, %40, %cst_17 {dimension_numbers = #tpu.dot_dimension_numbers<[1], [0], [0], [1], [0, 0, 1, 1], [], []>} : vector<16x4xbf16>, vector<4x256xbf16>, vector<16x256xf32> -> vector<16x256xf32>
    %47 = arith.addf %44, %46 : vector<16x256xf32>
    %48 = vector.extract_strided_slice %42 {offsets = [0, 0], sizes = [16, 256], strides = [1, 1]} : vector<32x256xf32> to vector<16x256xf32>
    %49 = arith.addf %48, %47 : vector<16x256xf32>
    %50 = vector.extract_strided_slice %42 {offsets = [16, 0], sizes = [16, 256], strides = [1, 1]} : vector<32x256xf32> to vector<16x256xf32>
    %51 = vector.broadcast %6 : vector<16x1xf32> to vector<16x256xf32>
    %52 = arith.addf %50, %51 : vector<16x256xf32>
    %53 = vector.broadcast %2 : vector<16x1xf32> to vector<16x256xf32>
    %54 = arith.mulf %49, %53 : vector<16x256xf32>
    %55 = vector.broadcast %3 : vector<16x1xf32> to vector<16x256xf32>
    %56 = arith.addf %54, %55 : vector<16x256xf32>
    %cst_18 = arith.constant 0.000000e+00 : f32
    %57 = vector.broadcast %cst_18 : f32 to vector<16x256xf32>
    %58 = arith.maximumf %56, %57 : vector<16x256xf32>
    %c1_i32_19 = arith.constant 1 : i32
    %59 = tpu.dynamic_rotate %58 by %c1_i32_19 dim 1 : vector<16x256xf32>, i32 -> vector<16x256xf32>
    %cst_20 = arith.constant 0.000000e+00 : f32
    %60 = vector.shape_cast %25 : vector<1x256xi1> to vector<1x256xi1>
    %61 = vector.broadcast %60 : vector<1x256xi1> to vector<16x256xi1>
    %62 = vector.broadcast %cst_20 : f32 to vector<16x256xf32>
    %63 = arith.select %61, %59, %62 : vector<16x256xi1>, vector<16x256xf32>
    %c255_i32_21 = arith.constant 255 : i32
    %64 = tpu.dynamic_rotate %58 by %c255_i32_21 dim 1 : vector<16x256xf32>, i32 -> vector<16x256xf32>
    %cst_22 = arith.constant 0.000000e+00 : f32
    %65 = vector.shape_cast %27 : vector<1x256xi1> to vector<1x256xi1>
    %66 = vector.broadcast %65 : vector<1x256xi1> to vector<16x256xi1>
    %67 = vector.broadcast %cst_22 : f32 to vector<16x256xf32>
    %68 = arith.select %66, %64, %67 : vector<16x256xi1>, vector<16x256xf32>
    %69 = arith.truncf %63 : vector<16x256xf32> to vector<16x256xbf16>
    %70 = arith.truncf %58 : vector<16x256xf32> to vector<16x256xbf16>
    %71 = arith.truncf %68 : vector<16x256xf32> to vector<16x256xbf16>
    %c0_23 = arith.constant 0 : index
    %c0_24 = arith.constant 0 : index
    %72 = vector.load %arg5[%c0_23, %c0_24] : memref<16x16xbf16, #tpu.memory_space<vmem>>, vector<16x16xbf16>
    %cst_25 = arith.constant dense<0.000000e+00> : vector<16x256xf32>
    %73 = tpu.matmul %72, %69, %cst_25 {dimension_numbers = #tpu.dot_dimension_numbers<[1], [0], [0], [1], [0, 0, 1, 1], [], []>} : vector<16x16xbf16>, vector<16x256xbf16>, vector<16x256xf32> -> vector<16x256xf32>
    %c0_26 = arith.constant 0 : index
    %c0_27 = arith.constant 0 : index
    %74 = vector.load %arg6[%c0_26, %c0_27] : memref<16x16xbf16, #tpu.memory_space<vmem>>, vector<16x16xbf16>
    %cst_28 = arith.constant dense<0.000000e+00> : vector<16x256xf32>
    %75 = tpu.matmul %74, %70, %cst_28 {dimension_numbers = #tpu.dot_dimension_numbers<[1], [0], [0], [1], [0, 0, 1, 1], [], []>} : vector<16x16xbf16>, vector<16x256xbf16>, vector<16x256xf32> -> vector<16x256xf32>
    %76 = arith.addf %73, %75 : vector<16x256xf32>
    %c0_29 = arith.constant 0 : index
    %c0_30 = arith.constant 0 : index
    %77 = vector.load %arg7[%c0_29, %c0_30] : memref<16x16xbf16, #tpu.memory_space<vmem>>, vector<16x16xbf16>
    %cst_31 = arith.constant dense<0.000000e+00> : vector<16x256xf32>
    %78 = tpu.matmul %77, %71, %cst_31 {dimension_numbers = #tpu.dot_dimension_numbers<[1], [0], [0], [1], [0, 0, 1, 1], [], []>} : vector<16x16xbf16>, vector<16x256xbf16>, vector<16x256xf32> -> vector<16x256xf32>
    %79 = arith.addf %76, %78 : vector<16x256xf32>
    %80 = vector.broadcast %4 : vector<16x1xf32> to vector<16x256xf32>
    %81 = arith.mulf %79, %80 : vector<16x256xf32>
    %82 = vector.broadcast %5 : vector<16x1xf32> to vector<16x256xf32>
    %83 = arith.addf %81, %82 : vector<16x256xf32>
    %84 = arith.addf %83, %52 : vector<16x256xf32>
    %cst_32 = arith.constant 0.000000e+00 : f32
    %85 = vector.broadcast %cst_32 : f32 to vector<16x256xf32>
    %86 = arith.maximumf %84, %85 : vector<16x256xf32>
    %c0_33 = arith.constant 0 : index
    %c0_34 = arith.constant 0 : index
    %87 = vector.load %arg9[%c0_33, %c0_34] : memref<16x256xf32, #tpu.memory_space<vmem>>, vector<16x256xf32>
    tpu.vector_store %arg9[%c0_33, %c0_34], %86 {strides = array<i32>} : memref<16x256xf32, #tpu.memory_space<vmem>>, vector<16x256xf32>,
    return
  }
  func.func @transform_0(%arg0: i32) -> (i32, i32) {
    %c0_i32 = arith.constant 0 : i32
    %c0_i32_0 = arith.constant 0 : i32
    return %c0_i32, %arg0 : i32, i32
  }
  func.func @transform_1(%arg0: i32) -> (i32, i32) {
    %c0_i32 = arith.constant 0 : i32
    %c0_i32_0 = arith.constant 0 : i32
    %c0_i32_1 = arith.constant 0 : i32
    return %c0_i32, %c0_i32_0 : i32, i32
  }
  func.func @transform_2(%arg0: i32) -> (i32, i32) {
    %c0_i32 = arith.constant 0 : i32
    %c0_i32_0 = arith.constant 0 : i32
    %c0_i32_1 = arith.constant 0 : i32
    return %c0_i32, %c0_i32_0 : i32, i32
  }
  func.func @transform_3(%arg0: i32) -> (i32, i32) {
    %c0_i32 = arith.constant 0 : i32
    %c0_i32_0 = arith.constant 0 : i32
    %c0_i32_1 = arith.constant 0 : i32
    return %c0_i32, %c0_i32_0 : i32, i32
  }
  func.func @transform_4(%arg0: i32) -> (i32, i32) {
    %c0_i32 = arith.constant 0 : i32
    %c0_i32_0 = arith.constant 0 : i32
    %c0_i32_1 = arith.constant 0 : i32
    return %c0_i32, %c0_i32_0 : i32, i32
  }
  func.func @transform_5(%arg0: i32) -> (i32, i32) {
    %c0_i32 = arith.constant 0 : i32
    %c0_i32_0 = arith.constant 0 : i32
    %c0_i32_1 = arith.constant 0 : i32
    return %c0_i32, %c0_i32_0 : i32, i32
  }
  func.func @transform_6(%arg0: i32) -> (i32, i32) {
    %c0_i32 = arith.constant 0 : i32
    %c0_i32_0 = arith.constant 0 : i32
    %c0_i32_1 = arith.constant 0 : i32
    return %c0_i32, %c0_i32_0 : i32, i32
  }
  func.func @transform_7(%arg0: i32) -> (i32, i32) {
    %c0_i32 = arith.constant 0 : i32
    %c0_i32_0 = arith.constant 0 : i32
    %c0_i32_1 = arith.constant 0 : i32
    return %c0_i32, %c0_i32_0 : i32, i32
  }
  func.func @transform_8(%arg0: i32) -> (i32, i32) {
    %c0_i32 = arith.constant 0 : i32
    %c0_i32_0 = arith.constant 0 : i32
    return %c0_i32, %arg0 : i32, i32
  }
}

</mosaic_0001>

<llo_original>
// kernel: _lambda_.1
$region0: #{_lambda_.1}
  #allocation0 [shape = 'u32[]', space=smem, size = 0x4, offset = 0x4, fixed_abs, tag = 'smem constant byte address 0x4 - core index']
  #allocation1 [shape = 'u32[144,128]{1,0:T(1,128)}', space=vmem, size = 0x12000, scoped, tag = 'internal scratch']
  %s0 = inlined_call_operand.hbm [shape: f32[4,512], index: 0, kind: input, shape index: {}]
  %s1 = inlined_call_operand.hbm [shape: bf16[16,4], index: 1, kind: input, shape index: {}]
  %s2 = inlined_call_operand.hbm [shape: bf16[32,4], index: 2, kind: input, shape index: {}]
  %s3 = inlined_call_operand.hbm [shape: bf16[16,4], index: 3, kind: input, shape index: {}]
  %s4 = inlined_call_operand.hbm [shape: bf16[16,16], index: 4, kind: input, shape index: {}]
  %s5 = inlined_call_operand.hbm [shape: bf16[16,16], index: 5, kind: input, shape index: {}]
  %s6 = inlined_call_operand.vmem [shape: bf16[16,16], index: 6, kind: input, shape index: {}]
  %s7 = inlined_call_operand.hbm [shape: f32[16,8], index: 7, kind: input, shape index: {}]
  %s8 = inlined_call_operand.vmem [shape: f32[16,512], index: 8, kind: output, shape index: {}]
  %s9 = sld [smem:[#allocation0]]
  $region112: #{_lambda_.1} parent=0
    _
  %s11 = ssub.s32 1, %s9
  %s12 = scalar_select 0, %s11, %s9
  $region1: #{_lambda_.1} parent=0
    #allocation2 [shape = 'u8[8192]{0}', space=vmem, size = 0x2000, scoped, tag = 'input window, operand 0']
    #allocation3 [shape = 's32[2]{0}', space=sflag, size = 0x8, scoped, tag = 'scoped memory for _lambda_.1']
    #allocation4 [shape = 'u8[4096]{0}', space=vmem, size = 0x1000, scoped, tag = 'input window, operand 1, single buffered']
    #allocation5 [shape = 's32[1]{0}', space=sflag, size = 0x4, scoped, tag = 'scoped memory for _lambda_.1']
    #allocation6 [shape = 'u8[8192]{0}', space=vmem, size = 0x2000, scoped, tag = 'input window, operand 2, single buffered']
    #allocation7 [shape = 'u8[4096]{0}', space=vmem, size = 0x1000, scoped, tag = 'input window, operand 3, single buffered']
    #allocation8 [shape = 's32[1]{0}', space=sflag, size = 0x4, scoped, tag = 'scoped memory for _lambda_.1']
    #allocation9 [shape = 'u8[4096]{0}', space=vmem, size = 0x1000, scoped, tag = 'input window, operand 4, single buffered']
    #allocation10 [shape = 'u8[4096]{0}', space=vmem, size = 0x1000, scoped, tag = 'input window, operand 5, single buffered']
    #allocation11 [shape = 's32[1]{0}', space=sflag, size = 0x4, scoped, tag = 'scoped memory for _lambda_.1']
    #allocation12 [shape = 'u8[8192]{0}', space=vmem, size = 0x2000, scoped, tag = 'input window, operand 7, single buffered']
    #allocation13 [shape = 'u8[32768]{0}', space=vmem, size = 0x8000, scoped, tag = 'output window, operand 0']
    %13 = vsyncpa [#allocation3], 0
    %s14 = scalar_lea.sflag [#allocation3], 1
    %15 = vsyncpa %s14, 0
    %16 = vsyncpa [#allocation5], 0
    %17 = vsyncpa [#allocation8], 0
    %18 = vsyncpa [#allocation11], 0
    loop: start=0, step=1, limit=4
    $region2: #{_lambda_.1} parent=1 // loop_pre_header
      _
    $region3: #{_lambda_.1} parent=1 // loop_header
      %s20 = sphi 0, %s24
      %p21 = scmp.ge.s32.totalorder %s20, 4
      %s30 = sphi 0, %s32
      %s33 = sphi 0, %s30
      %s34 = sphi 0, %s33
      %s50 = sphi 0, %s34
      %s54 = sphi 0, %s54
      %s56 = sphi 0, %s54
      %s57 = sphi 0, %s56
      %s71 = sphi 0, %s57
      %s75 = sphi 0, %s75
      %s77 = sphi 0, %s75
      %s78 = sphi 0, %s77
      %s92 = sphi 0, %s78
      %s96 = sphi 0, %s96
      %s98 = sphi 0, %s96
      %s99 = sphi 0, %s98
      %s113 = sphi 0, %s99
      %s117 = sphi 0, %s117
      %s119 = sphi 0, %s117
      %s120 = sphi 0, %s119
      %s134 = sphi 0, %s120
      %s138 = sphi 0, %s138
      %s140 = sphi 0, %s138
      %s141 = sphi 0, %s140
      %s155 = sphi 0, %s141
      %s159 = sphi 0, %s159
      %s161 = sphi 0, %s159
      %s162 = sphi 0, %s161
      %s176 = sphi 0, %s162
      %s180 = sphi 0, %s180
      %s182 = sphi 0, %s180
      %s183 = sphi 0, %s182
      %s197 = sphi 0, %s183
      %s203 = sphi 0, %s205
      %s206 = sphi 0, %s203
      %s207 = sphi 0, %s206
      %s223 = sphi 0, %s207
    $region4: #{_lambda_.1} parent=1 // loop_header_branch
      %23 = sbr.rel (%p21) target = $region8
    $region5: #{_lambda_.1} parent=1 // loop_body
      %s25 = ssub.s32 %s20, 1
      %s26 = ssub.s32 %s20, 2
      %s27 = sadd.s32 %s20, 1
      %s28 = ssub.s32 %s20, %s27
      %p29 = scmp.eq.s32.totalorder %s28, 0
      %s31 = sadd.s32 %s30, 1
      %s32 = scalar_select %p29, %s30, %s31
      %p35 = pneg %p29
      %p36 = scmp.eq.s32.totalorder %s20, 1
      %p37 = por %p35, %p36
      %p38 = scmp.ne.s32.totalorder %s30, %s33
      %p39 = scmp.eq.s32.totalorder %s20, 0
      %p40 = por %p38, %p39
      %p41 = scmp.ne.s32.totalorder %s30, %s33
      %p42 = scmp.eq.s32.totalorder %s25, 1
      %p43 = por %p41, %p42
      %p44 = scmp.ne.s32.totalorder %s33, %s34
      %p45 = scmp.eq.s32.totalorder %s25, 0
      %p46 = por %p44, %p45
      %p47 = scmp.ne.s32.totalorder %s33, %s34
      %p48 = scmp.eq.s32.totalorder %s26, 1
      %p49 = por %p47, %p48
      %p51 = scmp.ne.s32.totalorder %s34, %s50
      %p52 = scmp.eq.s32.totalorder %s26, 0
      %p53 = por %p51, %p52
      %s55 = sadd.s32 %s54, 1
      %p58 = scmp.eq.s32.totalorder %s20, 1
      %p59 = scmp.ne.s32.totalorder %s54, %s56
      %p60 = scmp.eq.s32.totalorder %s20, 0
      %p61 = por %p59, %p60
      %p62 = scmp.ne.s32.totalorder %s54, %s56
      %p63 = scmp.eq.s32.totalorder %s25, 1
      %p64 = por %p62, %p63
      %p65 = scmp.ne.s32.totalorder %s56, %s57
      %p66 = scmp.eq.s32.totalorder %s25, 0
      %p67 = por %p65, %p66
      %p68 = scmp.ne.s32.totalorder %s56, %s57
      %p69 = scmp.eq.s32.totalorder %s26, 1
      %p70 = por %p68, %p69
      %p72 = scmp.ne.s32.totalorder %s57, %s71
      %p73 = scmp.eq.s32.totalorder %s26, 0
      %p74 = por %p72, %p73
      %s76 = sadd.s32 %s75, 1
      %p79 = scmp.eq.s32.totalorder %s20, 1
      %p80 = scmp.ne.s32.totalorder %s75, %s77
      %p81 = scmp.eq.s32.totalorder %s20, 0
      %p82 = por %p80, %p81
      %p83 = scmp.ne.s32.totalorder %s75, %s77
      %p84 = scmp.eq.s32.totalorder %s25, 1
      %p85 = por %p83, %p84
      %p86 = scmp.ne.s32.totalorder %s77, %s78
      %p87 = scmp.eq.s32.totalorder %s25, 0
      %p88 = por %p86, %p87
      %p89 = scmp.ne.s32.totalorder %s77, %s78
      %p90 = scmp.eq.s32.totalorder %s26, 1
      %p91 = por %p89, %p90
      %p93 = scmp.ne.s32.totalorder %s78, %s92
      %p94 = scmp.eq.s32.totalorder %s26, 0
      %p95 = por %p93, %p94
      %s97 = sadd.s32 %s96, 1
      %p100 = scmp.eq.s32.totalorder %s20, 1
      %p101 = scmp.ne.s32.totalorder %s96, %s98
      %p102 = scmp.eq.s32.totalorder %s20, 0
      %p103 = por %p101, %p102
      %p104 = scmp.ne.s32.totalorder %s96, %s98
      %p105 = scmp.eq.s32.totalorder %s25, 1
      %p106 = por %p104, %p105
      %p107 = scmp.ne.s32.totalorder %s98, %s99
      %p108 = scmp.eq.s32.totalorder %s25, 0
      %p109 = por %p107, %p108
      %p110 = scmp.ne.s32.totalorder %s98, %s99
      %p111 = scmp.eq.s32.totalorder %s26, 1
      %p112 = por %p110, %p111
      %p114 = scmp.ne.s32.totalorder %s99, %s113
      %p115 = scmp.eq.s32.totalorder %s26, 0
      %p116 = por %p114, %p115
      %s118 = sadd.s32 %s117, 1
      %p121 = scmp.eq.s32.totalorder %s20, 1
      %p122 = scmp.ne.s32.totalorder %s117, %s119
      %p123 = scmp.eq.s32.totalorder %s20, 0
      %p124 = por %p122, %p123
      %p125 = scmp.ne.s32.totalorder %s117, %s119
      %p126 = scmp.eq.s32.totalorder %s25, 1
      %p127 = por %p125, %p126
      %p128 = scmp.ne.s32.totalorder %s119, %s120
      %p129 = scmp.eq.s32.totalorder %s25, 0
      %p130 = por %p128, %p129
      %p131 = scmp.ne.s32.totalorder %s119, %s120
      %p132 = scmp.eq.s32.totalorder %s26, 1
      %p133 = por %p131, %p132
      %p135 = scmp.ne.s32.totalorder %s120, %s134
      %p136 = scmp.eq.s32.totalorder %s26, 0
      %p137 = por %p135, %p136
      %s139 = sadd.s32 %s138, 1
      %p142 = scmp.eq.s32.totalorder %s20, 1
      %p143 = scmp.ne.s32.totalorder %s138, %s140
      %p144 = scmp.eq.s32.totalorder %s20, 0
      %p145 = por %p143, %p144
      %p146 = scmp.ne.s32.totalorder %s138, %s140
      %p147 = scmp.eq.s32.totalorder %s25, 1
      %p148 = por %p146, %p147
      %p149 = scmp.ne.s32.totalorder %s140, %s141
      %p150 = scmp.eq.s32.totalorder %s25, 0
      %p151 = por %p149, %p150
      %p152 = scmp.ne.s32.totalorder %s140, %s141
      %p153 = scmp.eq.s32.totalorder %s26, 1
      %p154 = por %p152, %p153
      %p156 = scmp.ne.s32.totalorder %s141, %s155
      %p157 = scmp.eq.s32.totalorder %s26, 0
      %p158 = por %p156, %p157
      %s160 = sadd.s32 %s159, 1
      %p163 = scmp.eq.s32.totalorder %s20, 1
      %p164 = scmp.ne.s32.totalorder %s159, %s161
      %p165 = scmp.eq.s32.totalorder %s20, 0
      %p166 = por %p164, %p165
      %p167 = scmp.ne.s32.totalorder %s159, %s161
      %p168 = scmp.eq.s32.totalorder %s25, 1
      %p169 = por %p167, %p168
      %p170 = scmp.ne.s32.totalorder %s161, %s162
      %p171 = scmp.eq.s32.totalorder %s25, 0
      %p172 = por %p170, %p171
      %p173 = scmp.ne.s32.totalorder %s161, %s162
      %p174 = scmp.eq.s32.totalorder %s26, 1
      %p175 = por %p173, %p174
      %p177 = scmp.ne.s32.totalorder %s162, %s176
      %p178 = scmp.eq.s32.totalorder %s26, 0
      %p179 = por %p177, %p178
      %s181 = sadd.s32 %s180, 1
      %p184 = scmp.eq.s32.totalorder %s20, 1
      %p185 = scmp.ne.s32.totalorder %s180, %s182
      %p186 = scmp.eq.s32.totalorder %s20, 0
      %p187 = por %p185, %p186
      %p188 = scmp.ne.s32.totalorder %s180, %s182
      %p189 = scmp.eq.s32.totalorder %s25, 1
      %p190 = por %p188, %p189
      %p191 = scmp.ne.s32.totalorder %s182, %s183
      %p192 = scmp.eq.s32.totalorder %s25, 0
      %p193 = por %p191, %p192
      %p194 = scmp.ne.s32.totalorder %s182, %s183
      %p195 = scmp.eq.s32.totalorder %s26, 1
      %p196 = por %p194, %p195
      %p198 = scmp.ne.s32.totalorder %s183, %s197
      %p199 = scmp.eq.s32.totalorder %s26, 0
      %p200 = por %p198, %p199
      %s201 = ssub.s32 %s20, %s27
      %p202 = scmp.eq.s32.totalorder %s201, 0
      %s204 = sadd.s32 %s203, 1
      %s205 = scalar_select %p202, %s203, %s204
      %p208 = pneg %p202
      %p209 = scmp.eq.s32.totalorder %s20, 1
      %p210 = por %p208, %p209
      %p211 = scmp.ne.s32.totalorder %s203, %s206
      %p212 = scmp.eq.s32.totalorder %s20, 0
      %p213 = por %p211, %p212
      %p214 = scmp.ne.s32.totalorder %s203, %s206
      %p215 = scmp.eq.s32.totalorder %s25, 1
      %p216 = por %p214, %p215
      %p217 = scmp.ne.s32.totalorder %s206, %s207
      %p218 = scmp.eq.s32.totalorder %s25, 0
      %p219 = por %p217, %p218
      %p220 = scmp.ne.s32.totalorder %s206, %s207
      %p221 = scmp.eq.s32.totalorder %s26, 1
      %p222 = por %p220, %p221
      %p224 = scmp.ne.s32.totalorder %s207, %s223
      %p225 = scmp.eq.s32.totalorder %s26, 0
      %p226 = por %p224, %p225
      %p227 = scmp.le.s32.totalorder 1, %s20
      %p228 = scmp.lt.s32.totalorder %s20, 3
      %p229 = pnand %p227, %p228
      %p230 = pneg %p229
      // Predicated region
      $region9: #{_lambda_.1} parent=5 // pred_check
        _
      $region10: #{_lambda_.1} parent=5 // pred_check_branch
        %232 = sbr.rel (%p229) target = $region12
      $region11: #{_lambda_.1} parent=5 // pred_region
        %s233 = ssub.s32 %s20, 1
        // Predicated region
        $region13: #{_lambda_.1} parent=11 // pred_check
          %p234 = pneg %p67
        $region14: #{_lambda_.1} parent=11 // pred_check_branch
          %236 = sbr.rel (%p234) target = $region16
        $region15: #{_lambda_.1} parent=11 // pred_region
          %s238 = ssub.s32 128, 128
          %239 = vsyncadd [#allocation5], %s238
          %s240 = sshll.u32 [#allocation4], 4
          %s241 = int_to_ptr.vmem [resolvable:$true] %s240
          %246 = dma.hbm_to_vmem [thread:$0]  %s1, 128, %s241, [#allocation5], 64, 64, 4
        $region16: #{_lambda_.1} parent=11 // pred_fallthru
          _
        // Predicated region
        $region17: #{_lambda_.1} parent=11 // pred_check
          %p247 = pneg %p88
        $region18: #{_lambda_.1} parent=11 // pred_check_branch
          %249 = sbr.rel (%p247) target = $region20
        $region19: #{_lambda_.1} parent=11 // pred_region
          %s251 = ssub.s32 256, 256
          %252 = vsyncadd [#allocation5], %s251
          %s253 = sshll.u32 [#allocation6], 4
          %s254 = int_to_ptr.vmem [resolvable:$true] %s253
          %259 = dma.hbm_to_vmem [thread:$0]  %s2, 256, %s254, [#allocation5], 64, 64, 4
        $region20: #{_lambda_.1} parent=11 // pred_fallthru
          _
        // Predicated region
        $region21: #{_lambda_.1} parent=11 // pred_check
          %p260 = pneg %p109
        $region22: #{_lambda_.1} parent=11 // pred_check_branch
          %262 = sbr.rel (%p260) target = $region24
        $region23: #{_lambda_.1} parent=11 // pred_region
          %s264 = ssub.s32 128, 128
          %265 = vsyncadd [#allocation8], %s264
          %s266 = sshll.u32 [#allocation7], 4
          %s267 = int_to_ptr.vmem [resolvable:$true] %s266
          %272 = dma.hbm_to_vmem [thread:$0]  %s3, 128, %s267, [#allocation8], 64, 64, 4
        $region24: #{_lambda_.1} parent=11 // pred_fallthru
          _
        // Predicated region
        $region25: #{_lambda_.1} parent=11 // pred_check
          %p273 = pneg %p130
        $region26: #{_lambda_.1} parent=11 // pred_check_branch
          %275 = sbr.rel (%p273) target = $region28
        $region27: #{_lambda_.1} parent=11 // pred_region
          %s277 = ssub.s32 128, 128
          %278 = vsyncadd [#allocation8], %s277
          %s279 = sshll.u32 [#allocation9], 4
          %s280 = int_to_ptr.vmem [resolvable:$true] %s279
          %285 = dma.hbm_to_vmem [thread:$0]  %s4, 128, %s280, [#allocation8], 64, 64, 4
        $region28: #{_lambda_.1} parent=11 // pred_fallthru
          _
        // Predicated region
        $region29: #{_lambda_.1} parent=11 // pred_check
          %p286 = pneg %p151
        $region30: #{_lambda_.1} parent=11 // pred_check_branch
          %288 = sbr.rel (%p286) target = $region32
        $region31: #{_lambda_.1} parent=11 // pred_region
          %s290 = ssub.s32 128, 128
          %291 = vsyncadd [#allocation11], %s290
          %s292 = sshll.u32 [#allocation10], 4
          %s293 = int_to_ptr.vmem [resolvable:$true] %s292
          %298 = dma.hbm_to_vmem [thread:$0]  %s5, 128, %s293, [#allocation11], 64, 64, 4
        $region32: #{_lambda_.1} parent=11 // pred_fallthru
          _
        // Predicated region
        $region33: #{_lambda_.1} parent=11 // pred_check
          %p299 = pneg %p172
        $region34: #{_lambda_.1} parent=11 // pred_check_branch
          %301 = sbr.rel (%p299) target = $region36
        $region35: #{_lambda_.1} parent=11 // pred_region
          _
        $region36: #{_lambda_.1} parent=11 // pred_fallthru
          _
        // Predicated region
        $region37: #{_lambda_.1} parent=11 // pred_check
          %p302 = pneg %p193
        $region38: #{_lambda_.1} parent=11 // pred_check_branch
          %304 = sbr.rel (%p302) target = $region40
        $region39: #{_lambda_.1} parent=11 // pred_region
          %s306 = ssub.s32 256, 256
          %307 = vsyncadd [#allocation11], %s306
          %s308 = sshll.u32 [#allocation12], 4
          %s309 = int_to_ptr.vmem [resolvable:$true] %s308
          %314 = dma.hbm_to_vmem [thread:$0]  %s7, 256, %s309, [#allocation11], 128, 128, 8
        $region40: #{_lambda_.1} parent=11 // pred_fallthru
          _
      $region12: #{_lambda_.1} parent=5 // pred_fallthru
        _
      %p315 = scmp.lt.s32.totalorder %s20, 2
      // Predicated region
      $region41: #{_lambda_.1} parent=5 // pred_check
        %p316 = pneg %p315
      $region42: #{_lambda_.1} parent=5 // pred_check_branch
        %318 = sbr.rel (%p316) target = $region44
      $region43: #{_lambda_.1} parent=5 // pred_region
        // Predicated region
        $region45: #{_lambda_.1} parent=43 // pred_check
          %p319 = pneg %p40
        $region46: #{_lambda_.1} parent=43 // pred_check_branch
          %321 = sbr.rel (%p319) target = $region48
        $region47: #{_lambda_.1} parent=43 // pred_region
          %s322 = sand.u32 %s30, 1
          %s323 = scalar_lea.sflag [#allocation3], %s322
          %s324 = sand.u32 %s30, 1
          %s325 = smul.addr %s324, 8
          %s326 = scalar_lea.vmem [#allocation2], %s325
          %s327 = smul.u32 2, %s20
          %s329 = ssub.s32 128, 128
          %330 = vsyncadd %s323, %s329
          %s331 = smul.addr %s327, 64
          %s332 = scalar_lea.hbm %s0, %s331
          %s334 = sshll.u32 %s326, 4
          %s335 = int_to_ptr.vmem [resolvable:$true] %s334
          %337 = dma.hbm_to_vmem [thread:$0]  %s332, 128, %s335, %s323
        $region48: #{_lambda_.1} parent=43 // pred_fallthru
          _
      $region44: #{_lambda_.1} parent=5 // pred_fallthru
        _
      %p338 = scmp.le.s32.totalorder 1, %s20
      %p339 = scmp.lt.s32.totalorder %s20, 3
      %p340 = pnand %p338, %p339
      %p341 = pneg %p340
      // Predicated region
      $region49: #{_lambda_.1} parent=5 // pred_check
        _
      $region50: #{_lambda_.1} parent=5 // pred_check_branch
        %343 = sbr.rel (%p340) target = $region52
      $region51: #{_lambda_.1} parent=5 // pred_region
        %s344 = ssub.s32 %s20, 1
        %s345 = sand.u32 %s33, 1
        %s346 = scalar_lea.sflag [#allocation3], %s345
        %s347 = sand.u32 %s33, 1
        %s348 = smul.addr %s347, 8
        %s349 = scalar_lea.vmem [#allocation2], %s348
        // Predicated region
        $region53: #{_lambda_.1} parent=51 // pred_check
          %p350 = pneg %p46
        $region54: #{_lambda_.1} parent=51 // pred_check_branch
          %352 = sbr.rel (%p350) target = $region56
        $region55: #{_lambda_.1} parent=51 // pred_region
          %353 = dma.done %s346, 128
        $region56: #{_lambda_.1} parent=51 // pred_fallthru
          _
        // Predicated region
        $region57: #{_lambda_.1} parent=51 // pred_check
          %p354 = pneg %p67
        $region58: #{_lambda_.1} parent=51 // pred_check_branch
          %356 = sbr.rel (%p354) target = $region60
        $region59: #{_lambda_.1} parent=51 // pred_region
          %357 = dma.done [#allocation5], 128
        $region60: #{_lambda_.1} parent=51 // pred_fallthru
          _
        // Predicated region
        $region61: #{_lambda_.1} parent=51 // pred_check
          %p358 = pneg %p88
        $region62: #{_lambda_.1} parent=51 // pred_check_branch
          %360 = sbr.rel (%p358) target = $region64
        $region63: #{_lambda_.1} parent=51 // pred_region
          %361 = dma.done [#allocation5], 256
        $region64: #{_lambda_.1} parent=51 // pred_fallthru
          _
        // Predicated region
        $region65: #{_lambda_.1} parent=51 // pred_check
          %p362 = pneg %p109
        $region66: #{_lambda_.1} parent=51 // pred_check_branch
          %364 = sbr.rel (%p362) target = $region68
        $region67: #{_lambda_.1} parent=51 // pred_region
          %365 = dma.done [#allocation8], 128
        $region68: #{_lambda_.1} parent=51 // pred_fallthru
          _
        // Predicated region
        $region69: #{_lambda_.1} parent=51 // pred_check
          %p366 = pneg %p130
        $region70: #{_lambda_.1} parent=51 // pred_check_branch
          %368 = sbr.rel (%p366) target = $region72
        $region71: #{_lambda_.1} parent=51 // pred_region
          %369 = dma.done [#allocation8], 128
        $region72: #{_lambda_.1} parent=51 // pred_fallthru
          _
        // Predicated region
        $region73: #{_lambda_.1} parent=51 // pred_check
          %p370 = pneg %p151
        $region74: #{_lambda_.1} parent=51 // pred_check_branch
          %372 = sbr.rel (%p370) target = $region76
        $region75: #{_lambda_.1} parent=51 // pred_region
          %373 = dma.done [#allocation11], 128
        $region76: #{_lambda_.1} parent=51 // pred_fallthru
          _
        // Predicated region
        $region77: #{_lambda_.1} parent=51 // pred_check
          %p374 = pneg %p193
        $region78: #{_lambda_.1} parent=51 // pred_check_branch
          %376 = sbr.rel (%p374) target = $region80
        $region79: #{_lambda_.1} parent=51 // pred_region
          %377 = dma.done [#allocation11], 256
        $region80: #{_lambda_.1} parent=51 // pred_fallthru
          _
        %s378 = sand.u32 %s33, 1
        %s379 = scalar_lea.sflag [#allocation3], %s378
        %s380 = sand.u32 %s33, 1
        %s381 = smul.addr %s380, 8
        %s382 = scalar_lea.vmem [#allocation2], %s381
        %p383 = pneg %p46
        %p384 = pneg %p43
        %p385 = pneg %p67
        %p386 = pneg %p64
        %p387 = pneg %p88
        %p388 = pneg %p85
        %p389 = pneg %p109
        %p390 = pneg %p106
        %p391 = pneg %p130
        %p392 = pneg %p127
        %p393 = pneg %p151
        %p394 = pneg %p148
        %p395 = pneg %p172
        %p396 = pneg %p169
        %p397 = pneg %p193
        %p398 = pneg %p190
        %p399 = pneg %p219
        %p400 = pneg %p216
        %s401 = sand.u32 %s206, 1
        %s402 = sand.u32 %s206, 1
        %s403 = smul.addr %s402, 32
        %s404 = scalar_lea.vmem [#allocation13], %s403
        %s405 = smul.u32 2, %s25
        %s406 = smul.u32 2, %s25
        %v408 = vld [vmem:[%s349] sm:$0xff]
        %v409 = vld [vmem:[#allocation12] sm:$0xff]
        %v410 = vld [vmem:[#allocation12 + $0x8] sm:$0xff]
        %v411 = vlaneseq
        %v412 = vand.u32 %v411, 127
        %v413 = vadd.s32 %v412, 128
        %vm414 = vcmp.lt.s32.totalorder %v412, 0
        %v415 = vsub.s32 0, %v412
        %v416 = vsel %vm414, %v415, %v412
        %v417 = vshrl.u32 %v416, 8
        %v418 = vand.u32 %v416, 255
        %v419 = vsub.s32 0, %v418
        %v420 = vsel %vm414, %v419, %v418
        %vm421 = vcmp.lt.s32.totalorder %v413, 0
        %v422 = vsub.s32 0, %v413
        %v423 = vsel %vm421, %v422, %v413
        %v424 = vshrl.u32 %v423, 8
        %v425 = vand.u32 %v423, 255
        %v426 = vsub.s32 0, %v425
        %v427 = vsel %vm421, %v426, %v425
        %vm428 = vcmp.ne.s32.totalorder %v420, 0
        %vm429 = vcmp.ne.s32.totalorder %v427, 0
        %vm430 = vcmp.lt.s32.totalorder %v420, 0
        %vm431 = vcmp.lt.s32.totalorder %v427, 0
        %vm432 = vmand %vm430, %vm428
        %vm433 = vmand %vm431, %vm429
        %v434 = vadd.s32 %v420, 256
        %v435 = vadd.s32 %v427, 256
        %v436 = vsel %vm432, %v434, %v420
        %v437 = vsel %vm433, %v435, %v427
        %vm438 = vcmp.ge.s32.totalorder %v436, 1
        %vm439 = vcmp.ge.s32.totalorder %v437, 1
        %vm440 = vcmp.le.s32.totalorder %v436, 254
        %vm441 = vcmp.le.s32.totalorder %v437, 254
        %v443 = vcombine.high %v408, %v408
        %445 = vrot.lane.b32.xlu0 %v408, 1
        %v446 = vpop.permute.xlu0 %445
        %447 = vrot.lane.b32.xlu0 %v443, 1
        %v448 = vpop.permute.xlu0 %447
        %vm449 = vcmp.lt.s32.totalorder %v412, 1
        %v450 = vsel %vm449, %v446, %v448
        %v451 = vsel %vm449, %v448, %v446
        %v452 = vsel %vm438, 1, 0
        %v453 = vsel %vm439, 1, 0
        %vm454 = vcmp.eq.s32.totalorder %v452, 1
        %vm455 = vcmp.eq.s32.totalorder %v453, 1
        %v456 = vsel %vm454, %v451, 0.0
        %v457 = vsel %vm455, %v450, 0.0
        %458 = vrot.lane.b32.xlu0 %v408, 127
        %v459 = vpop.permute.xlu0 %458
        %460 = vrot.lane.b32.xlu0 %v443, 127
        %v461 = vpop.permute.xlu0 %460
        %vm462 = vcmp.lt.s32.totalorder %v412, 127
        %v463 = vsel %vm462, %v459, %v461
        %v464 = vsel %vm462, %v461, %v459
        %v465 = vsel %vm440, 1, 0
        %v466 = vsel %vm441, 1, 0
        %vm467 = vcmp.eq.s32.totalorder %v465, 1
        %vm468 = vcmp.eq.s32.totalorder %v466, 1
        %v469 = vsel %vm467, %v463, 0.0
        %v470 = vsel %vm468, %v464, 0.0
        %v471 = vpack.c.bf16 %v456, %v456
        %v472 = vpack.c.bf16 %v457, %v457
        %v473 = vpack.c.bf16 %v408, %v408
        %v474 = vpack.c.bf16 %v443, %v443
        %v475 = vpack.c.bf16 %v469, %v469
        %v476 = vpack.c.bf16 %v470, %v470
        %v477 = vld [vmem:[#allocation6] sm:$0xf]
        %v478 = vld [vmem:[#allocation6 + $0x4] sm:$0xf]
        %v479 = vld [vmem:[#allocation6 + $0x8] sm:$0xf]
        %v480 = vld [vmem:[#allocation6 + $0xc] sm:$0xf]
        %v485 = vunpack.c.l.b16 %v477
        %v486 = vunpack.c.l.b16 %v478
        %v487 = vunpack.c.l.b16 %v479
        %v488 = vunpack.c.l.b16 %v480
        %v489 = vpack.c.b16 %v486, %v485
        %v490 = vpack.c.b16 %v488, %v487
        %vm491 = vcmask 31744
        %v493 = vsel %vm491, %v489, 0
        %v496 = vsel %vm491, %v490, 0
        %vm498 = vcmask 1041408
        %v500 = vsel %vm498, %v473, 0
        %v503 = vsel %vm498, %v474, 0
        %505 = vmatprep.subr.bf16.mxu0 0
        %506 = vmatpush1.bf16.msra.mxu0 0
        %507 = vmatprep.subr.bf16.mxu0 0
        %508 = vmatpush1.bf16.msra.mxu0 0
        %509 = vmatprep.subr.bf16.mxu0 0
        %510 = vmatpush1.bf16.msra.mxu0 0
        %511 = vmatprep.subr.bf16.mxu0 0
        %512 = vmatpush1.bf16.msra.mxu0 0
        %513 = vmatprep.subr.bf16.mxu0 0
        %514 = vmatpush1.bf16.msra.mxu0 0
        %515 = vmatprep.subr.bf16.mxu0 0
        %516 = vmatpush1.bf16.msra.mxu0 0
        %517 = vmatprep.subr.bf16.mxu0 0
        %518 = vmatpush1.bf16.msra.mxu0 0
        %519 = vmatprep.subr.bf16.mxu0 %v503
        %520 = vmatpush1.bf16.msra.mxu0 %v500
        %521 = vmatprep.subr.bf16.mxu0 0
        %522 = vmatpush2.bf16.msra.mxu0 0
        %523 = vmatprep.subr.bf16.mxu0 0
        %524 = vmatpush2.bf16.msra.mxu0 0
        %525 = vmatprep.subr.bf16.mxu0 0
        %526 = vmatpush2.bf16.msra.mxu0 0
        %527 = vmatprep.subr.bf16.mxu0 0
        %528 = vmatpush2.bf16.msra.mxu0 0
        %529 = vmatprep.subr.bf16.mxu0 0
        %530 = vmatpush2.bf16.msra.mxu0 0
        %531 = vmatprep.subr.bf16.mxu0 0
        %532 = vmatpush2.bf16.msra.mxu0 0
        %533 = vmatprep.subr.bf16.mxu0 0
        %534 = vmatpush2.bf16.msra.mxu0 0
        %535 = vmatprep.subr.bf16.mxu0 0
        %536 = vmatpush2.bf16.msra.mxu0 0
        %537 = vmatprep.mubr.bf16.mxu0 0
        %538 = vmatmul.mubr.bf16.gmra.mxu0 %v493
        %v539 = vpop.f32.mrf.mxu0
        %v540 = vadd.f32 0.0, %v539
        %v541 = vpop.f32.mrf.mxu0
        %v542 = vadd.f32 0.0, %v541
        %v543 = vpop.f32.mrf.mxu0
        %v544 = vadd.f32 0.0, %v543
        %v545 = vpop.f32.mrf.mxu0
        %v546 = vadd.f32 0.0, %v545
        %547 = vmatprep.mubr.bf16.mxu0 0
        %548 = vmatmul.mubr.bf16.gmra.mxu0 %v496
        %v549 = vpop.f32.mrf.mxu0
        %v550 = vadd.f32 0.0, %v549
        %v551 = vpop.f32.mrf.mxu0
        %v552 = vadd.f32 0.0, %v551
        %v553 = vpop.f32.mrf.mxu0
        %v554 = vadd.f32 0.0, %v553
        %v555 = vpop.f32.mrf.mxu0
        %v556 = vadd.f32 0.0, %v555
        %557 = vdwg.mxu0
        %v558 = vld [vmem:[#allocation4] sm:$0xf]
        %v559 = vld [vmem:[#allocation4 + $0x4] sm:$0xf]
        %v560 = vld [vmem:[#allocation7] sm:$0xf]
        %v561 = vld [vmem:[#allocation7 + $0x4] sm:$0xf]
        %v564 = vunpack.c.l.b16 %v560
        %v565 = vunpack.c.l.b16 %v561
        %v566 = vpack.c.b16 %v565, %v564
        %v568 = vsel %vm491, %v566, 0
        %v571 = vsel %vm498, %v475, 0
        %v574 = vsel %vm498, %v476, 0
        %576 = vmatprep.subr.bf16.mxu0 0
        %577 = vmatpush1.bf16.msra.mxu0 0
        %578 = vmatprep.subr.bf16.mxu0 0
        %579 = vmatpush1.bf16.msra.mxu0 0
        %580 = vmatprep.subr.bf16.mxu0 0
        %581 = vmatpush1.bf16.msra.mxu0 0
        %582 = vmatprep.subr.bf16.mxu0 0
        %583 = vmatpush1.bf16.msra.mxu0 0
        %584 = vmatprep.subr.bf16.mxu0 0
        %585 = vmatpush1.bf16.msra.mxu0 0
        %586 = vmatprep.subr.bf16.mxu0 0
        %587 = vmatpush1.bf16.msra.mxu0 0
        %588 = vmatprep.subr.bf16.mxu0 0
        %589 = vmatpush1.bf16.msra.mxu0 0
        %590 = vmatprep.subr.bf16.mxu0 %v574
        %591 = vmatpush1.bf16.msra.mxu0 %v571
        %592 = vmatprep.subr.bf16.mxu0 0
        %593 = vmatpush2.bf16.msra.mxu0 0
        %594 = vmatprep.subr.bf16.mxu0 0
        %595 = vmatpush2.bf16.msra.mxu0 0
        %596 = vmatprep.subr.bf16.mxu0 0
        %597 = vmatpush2.bf16.msra.mxu0 0
        %598 = vmatprep.subr.bf16.mxu0 0
        %599 = vmatpush2.bf16.msra.mxu0 0
        %600 = vmatprep.subr.bf16.mxu0 0
        %601 = vmatpush2.bf16.msra.mxu0 0
        %602 = vmatprep.subr.bf16.mxu0 0
        %603 = vmatpush2.bf16.msra.mxu0 0
        %604 = vmatprep.subr.bf16.mxu0 0
        %605 = vmatpush2.bf16.msra.mxu0 0
        %606 = vmatprep.subr.bf16.mxu0 0
        %607 = vmatpush2.bf16.msra.mxu0 0
        %608 = vmatprep.mubr.bf16.mxu0 0
        %609 = vmatmul.mubr.bf16.gmra.mxu0 %v568
        %v610 = vpop.f32.mrf.mxu0
        %v611 = vadd.f32 0.0, %v610
        %v612 = vpop.f32.mrf.mxu0
        %v613 = vadd.f32 0.0, %v612
        %v614 = vpop.f32.mrf.mxu0
        %v615 = vadd.f32 0.0, %v614
        %v616 = vpop.f32.mrf.mxu0
        %v617 = vadd.f32 0.0, %v616
        %618 = vdwg.mxu0
        %v621 = vunpack.c.l.b16 %v558
        %v622 = vunpack.c.l.b16 %v559
        %v623 = vpack.c.b16 %v622, %v621
        %v625 = vsel %vm491, %v623, 0
        %v628 = vsel %vm498, %v471, 0
        %v631 = vsel %vm498, %v472, 0
        %633 = vmatprep.subr.bf16.mxu0 0
        %634 = vmatpush1.bf16.msra.mxu0 0
        %635 = vmatprep.subr.bf16.mxu0 0
        %636 = vmatpush1.bf16.msra.mxu0 0
        %637 = vmatprep.subr.bf16.mxu0 0
        %638 = vmatpush1.bf16.msra.mxu0 0
        %639 = vmatprep.subr.bf16.mxu0 0
        %640 = vmatpush1.bf16.msra.mxu0 0
        %641 = vmatprep.subr.bf16.mxu0 0
        %642 = vmatpush1.bf16.msra.mxu0 0
        %643 = vmatprep.subr.bf16.mxu0 0
        %644 = vmatpush1.bf16.msra.mxu0 0
        %645 = vmatprep.subr.bf16.mxu0 0
        %646 = vmatpush1.bf16.msra.mxu0 0
        %647 = vmatprep.subr.bf16.mxu0 %v631
        %648 = vmatpush1.bf16.msra.mxu0 %v628
        %649 = vmatprep.subr.bf16.mxu0 0
        %650 = vmatpush2.bf16.msra.mxu0 0
        %651 = vmatprep.subr.bf16.mxu0 0
        %652 = vmatpush2.bf16.msra.mxu0 0
        %653 = vmatprep.subr.bf16.mxu0 0
        %654 = vmatpush2.bf16.msra.mxu0 0
        %655 = vmatprep.subr.bf16.mxu0 0
        %656 = vmatpush2.bf16.msra.mxu0 0
        %657 = vmatprep.subr.bf16.mxu0 0
        %658 = vmatpush2.bf16.msra.mxu0 0
        %659 = vmatprep.subr.bf16.mxu0 0
        %660 = vmatpush2.bf16.msra.mxu0 0
        %661 = vmatprep.subr.bf16.mxu0 0
        %662 = vmatpush2.bf16.msra.mxu0 0
        %663 = vmatprep.subr.bf16.mxu0 0
        %664 = vmatpush2.bf16.msra.mxu0 0
        %665 = vmatprep.mubr.bf16.mxu0 0
        %666 = vmatmul.mubr.bf16.gmra.mxu0 %v625
        %v667 = vpop.f32.mrf.mxu0
        %v668 = vadd.f32 %v611, %v667
        %v669 = vpop.f32.mrf.mxu0
        %v670 = vadd.f32 %v613, %v669
        %v671 = vpop.f32.mrf.mxu0
        %v672 = vadd.f32 %v615, %v671
        %v673 = vpop.f32.mrf.mxu0
        %v674 = vadd.f32 %v617, %v673
        %675 = vdwg.mxu0
        %v676 = vadd.f32 %v540, %v668
        %v677 = vadd.f32 %v542, %v670
        %v678 = vadd.f32 %v544, %v672
        %v679 = vadd.f32 %v546, %v674
        %681 = vset.pattern.permute.xlu0 4
        %682 = vperm.xlu0 %681, %v409
        %v683 = vpop.permute.xlu0 %682
        %686 = vset.pattern.permute.xlu0 4
        %687 = vperm.xlu0 %686, %v410
        %v688 = vpop.permute.xlu0 %687
        %v690 = vadd.f32 %v550, %v683
        %v691 = vadd.f32 %v552, %v683
        %v692 = vadd.f32 %v554, %v688
        %v693 = vadd.f32 %v556, %v688
        %694 = vset.pattern.permute.xlu0 0
        %695 = vperm.xlu0 %694, %v409
        %v696 = vpop.permute.xlu0 %695
        %698 = vset.pattern.permute.xlu0 0
        %699 = vperm.xlu0 %698, %v410
        %v700 = vpop.permute.xlu0 %699
        %v702 = vmul.f32 %v676, %v696
        %v703 = vmul.f32 %v677, %v696
        %v704 = vmul.f32 %v678, %v700
        %v705 = vmul.f32 %v679, %v700
        %706 = vset.pattern.permute.xlu0 1
        %707 = vperm.xlu0 %706, %v409
        %v708 = vpop.permute.xlu0 %707
        %710 = vset.pattern.permute.xlu0 1
        %711 = vperm.xlu0 %710, %v410
        %v712 = vpop.permute.xlu0 %711
        %v714 = vadd.f32 %v702, %v708
        %v715 = vadd.f32 %v703, %v708
        %v716 = vadd.f32 %v704, %v712
        %v717 = vadd.f32 %v705, %v712
        %v718 = vmax.f32 %v714, 0.0
        %v719 = vmax.f32 %v715, 0.0
        %v720 = vmax.f32 %v716, 0.0
        %v721 = vmax.f32 %v717, 0.0
        %722 = vrot.lane.b32.xlu0 %v718, 1
        %v723 = vpop.permute.xlu0 %722
        %724 = vrot.lane.b32.xlu0 %v720, 1
        %v725 = vpop.permute.xlu0 %724
        %726 = vrot.lane.b32.xlu0 %v719, 1
        %v727 = vpop.permute.xlu0 %726
        %728 = vrot.lane.b32.xlu0 %v721, 1
        %v729 = vpop.permute.xlu0 %728
        %v730 = vsel %vm449, %v723, %v727
        %v731 = vsel %vm449, %v725, %v729
        %v732 = vsel %vm449, %v727, %v723
        %v733 = vsel %vm449, %v729, %v725
        %v734 = vsel %vm454, %v732, 0.0
        %v735 = vsel %vm455, %v730, 0.0
        %v736 = vsel %vm454, %v733, 0.0
        %v737 = vsel %vm455, %v731, 0.0
        %738 = vrot.lane.b32.xlu0 %v718, 127
        %v739 = vpop.permute.xlu0 %738
        %740 = vrot.lane.b32.xlu0 %v720, 127
        %v741 = vpop.permute.xlu0 %740
        %742 = vrot.lane.b32.xlu0 %v719, 127
        %v743 = vpop.permute.xlu0 %742
        %744 = vrot.lane.b32.xlu0 %v721, 127
        %v745 = vpop.permute.xlu0 %744
        %v746 = vsel %vm462, %v739, %v743
        %v747 = vsel %vm462, %v741, %v745
        %v748 = vsel %vm462, %v743, %v739
        %v749 = vsel %vm462, %v745, %v741
        %v750 = vsel %vm467, %v746, 0.0
        %v751 = vsel %vm468, %v748, 0.0
        %v752 = vsel %vm467, %v747, 0.0
        %v753 = vsel %vm468, %v749, 0.0
        %v754 = vpack.c.bf16 %v736, %v734
        %v755 = vpack.c.bf16 %v737, %v735
        %v756 = vpack.c.bf16 %v720, %v718
        %v757 = vpack.c.bf16 %v721, %v719
        %v758 = vpack.c.bf16 %v752, %v750
        %v759 = vpack.c.bf16 %v753, %v751
        %v760 = vld [vmem:[#allocation9] sm:$0xf]
        %v761 = vld [vmem:[#allocation9 + $0x4] sm:$0xf]
        %v762 = vld [vmem:[#allocation10] sm:$0xf]
        %v763 = vld [vmem:[#allocation10 + $0x4] sm:$0xf]
        %v766 = vunpack.c.l.b16 %v762
        %v767 = vunpack.c.l.b16 %v763
        %v768 = vpack.c.b16 %v767, %v766
        %vm769 = vcmask 130048
        %v771 = vsel %vm769, %v768, 0
        %773 = vmatprep.subr.bf16.mxu0 0
        %774 = vmatpush1.bf16.msra.mxu0 0
        %775 = vmatprep.subr.bf16.mxu0 0
        %776 = vmatpush1.bf16.msra.mxu0 0
        %777 = vmatprep.subr.bf16.mxu0 0
        %778 = vmatpush1.bf16.msra.mxu0 0
        %779 = vmatprep.subr.bf16.mxu0 0
        %780 = vmatpush1.bf16.msra.mxu0 0
        %781 = vmatprep.subr.bf16.mxu0 0
        %782 = vmatpush1.bf16.msra.mxu0 0
        %783 = vmatprep.subr.bf16.mxu0 0
        %784 = vmatpush1.bf16.msra.mxu0 0
        %785 = vmatprep.subr.bf16.mxu0 0
        %786 = vmatpush1.bf16.msra.mxu0 0
        %787 = vmatprep.subr.bf16.mxu0 %v757
        %788 = vmatpush1.bf16.msra.mxu0 %v756
        %789 = vmatprep.subr.bf16.mxu0 0
        %790 = vmatpush2.bf16.msra.mxu0 0
        %791 = vmatprep.subr.bf16.mxu0 0
        %792 = vmatpush2.bf16.msra.mxu0 0
        %793 = vmatprep.subr.bf16.mxu0 0
        %794 = vmatpush2.bf16.msra.mxu0 0
        %795 = vmatprep.subr.bf16.mxu0 0
        %796 = vmatpush2.bf16.msra.mxu0 0
        %797 = vmatprep.subr.bf16.mxu0 0
        %798 = vmatpush2.bf16.msra.mxu0 0
        %799 = vmatprep.subr.bf16.mxu0 0
        %800 = vmatpush2.bf16.msra.mxu0 0
        %801 = vmatprep.subr.bf16.mxu0 0
        %802 = vmatpush2.bf16.msra.mxu0 0
        %803 = vmatprep.subr.bf16.mxu0 0
        %804 = vmatpush2.bf16.msra.mxu0 0
        %805 = vmatprep.mubr.bf16.mxu0 0
        %806 = vmatmul.mubr.bf16.gmra.mxu0 %v771
        %v807 = vpop.f32.mrf.mxu0
        %v808 = vadd.f32 0.0, %v807
        %v809 = vpop.f32.mrf.mxu0
        %v810 = vadd.f32 0.0, %v809
        %v811 = vpop.f32.mrf.mxu0
        %v812 = vadd.f32 0.0, %v811
        %v813 = vpop.f32.mrf.mxu0
        %v814 = vadd.f32 0.0, %v813
        %815 = vdwg.mxu0
        %v818 = vunpack.c.l.b16 %v760
        %v819 = vunpack.c.l.b16 %v761
        %v820 = vpack.c.b16 %v819, %v818
        %v822 = vsel %vm769, %v820, 0
        %824 = vmatprep.subr.bf16.mxu0 0
        %825 = vmatpush1.bf16.msra.mxu0 0
        %826 = vmatprep.subr.bf16.mxu0 0
        %827 = vmatpush1.bf16.msra.mxu0 0
        %828 = vmatprep.subr.bf16.mxu0 0
        %829 = vmatpush1.bf16.msra.mxu0 0
        %830 = vmatprep.subr.bf16.mxu0 0
        %831 = vmatpush1.bf16.msra.mxu0 0
        %832 = vmatprep.subr.bf16.mxu0 0
        %833 = vmatpush1.bf16.msra.mxu0 0
        %834 = vmatprep.subr.bf16.mxu0 0
        %835 = vmatpush1.bf16.msra.mxu0 0
        %836 = vmatprep.subr.bf16.mxu0 0
        %837 = vmatpush1.bf16.msra.mxu0 0
        %838 = vmatprep.subr.bf16.mxu0 %v755
        %839 = vmatpush1.bf16.msra.mxu0 %v754
        %840 = vmatprep.subr.bf16.mxu0 0
        %841 = vmatpush2.bf16.msra.mxu0 0
        %842 = vmatprep.subr.bf16.mxu0 0
        %843 = vmatpush2.bf16.msra.mxu0 0
        %844 = vmatprep.subr.bf16.mxu0 0
        %845 = vmatpush2.bf16.msra.mxu0 0
        %846 = vmatprep.subr.bf16.mxu0 0
        %847 = vmatpush2.bf16.msra.mxu0 0
        %848 = vmatprep.subr.bf16.mxu0 0
        %849 = vmatpush2.bf16.msra.mxu0 0
        %850 = vmatprep.subr.bf16.mxu0 0
        %851 = vmatpush2.bf16.msra.mxu0 0
        %852 = vmatprep.subr.bf16.mxu0 0
        %853 = vmatpush2.bf16.msra.mxu0 0
        %854 = vmatprep.subr.bf16.mxu0 0
        %855 = vmatpush2.bf16.msra.mxu0 0
        %856 = vmatprep.mubr.bf16.mxu0 0
        %857 = vmatmul.mubr.bf16.gmra.mxu0 %v822
        %v858 = vpop.f32.mrf.mxu0
        %v859 = vadd.f32 %v808, %v858
        %v860 = vpop.f32.mrf.mxu0
        %v861 = vadd.f32 %v810, %v860
        %v862 = vpop.f32.mrf.mxu0
        %v863 = vadd.f32 %v812, %v862
        %v864 = vpop.f32.mrf.mxu0
        %v865 = vadd.f32 %v814, %v864
        %866 = vdwg.mxu0
        %v867 = vld [vmem:[%s6] sm:$0xf]
        %v868 = vld [vmem:[%s6 + $0x4] sm:$0xf]
        %v871 = vunpack.c.l.b16 %v867
        %v872 = vunpack.c.l.b16 %v868
        %v873 = vpack.c.b16 %v872, %v871
        %v875 = vsel %vm769, %v873, 0
        %877 = vmatprep.subr.bf16.mxu0 0
        %878 = vmatpush1.bf16.msra.mxu0 0
        %879 = vmatprep.subr.bf16.mxu0 0
        %880 = vmatpush1.bf16.msra.mxu0 0
        %881 = vmatprep.subr.bf16.mxu0 0
        %882 = vmatpush1.bf16.msra.mxu0 0
        %883 = vmatprep.subr.bf16.mxu0 0
        %884 = vmatpush1.bf16.msra.mxu0 0
        %885 = vmatprep.subr.bf16.mxu0 0
        %886 = vmatpush1.bf16.msra.mxu0 0
        %887 = vmatprep.subr.bf16.mxu0 0
        %888 = vmatpush1.bf16.msra.mxu0 0
        %889 = vmatprep.subr.bf16.mxu0 0
        %890 = vmatpush1.bf16.msra.mxu0 0
        %891 = vmatprep.subr.bf16.mxu0 %v759
        %892 = vmatpush1.bf16.msra.mxu0 %v758
        %893 = vmatprep.subr.bf16.mxu0 0
        %894 = vmatpush2.bf16.msra.mxu0 0
        %895 = vmatprep.subr.bf16.mxu0 0
        %896 = vmatpush2.bf16.msra.mxu0 0
        %897 = vmatprep.subr.bf16.mxu0 0
        %898 = vmatpush2.bf16.msra.mxu0 0
        %899 = vmatprep.subr.bf16.mxu0 0
        %900 = vmatpush2.bf16.msra.mxu0 0
        %901 = vmatprep.subr.bf16.mxu0 0
        %902 = vmatpush2.bf16.msra.mxu0 0
        %903 = vmatprep.subr.bf16.mxu0 0
        %904 = vmatpush2.bf16.msra.mxu0 0
        %905 = vmatprep.subr.bf16.mxu0 0
        %906 = vmatpush2.bf16.msra.mxu0 0
        %907 = vmatprep.subr.bf16.mxu0 0
        %908 = vmatpush2.bf16.msra.mxu0 0
        %909 = vmatprep.mubr.bf16.mxu0 0
        %910 = vmatmul.mubr.bf16.gmra.mxu0 %v875
        %v911 = vpop.f32.mrf.mxu0
        %v912 = vadd.f32 0.0, %v911
        %v913 = vpop.f32.mrf.mxu0
        %v914 = vadd.f32 0.0, %v913
        %v915 = vpop.f32.mrf.mxu0
        %v916 = vadd.f32 0.0, %v915
        %v917 = vpop.f32.mrf.mxu0
        %v918 = vadd.f32 0.0, %v917
        %919 = vdwg.mxu0
        %v920 = vadd.f32 %v859, %v912
        %v921 = vadd.f32 %v861, %v914
        %v922 = vadd.f32 %v863, %v916
        %v923 = vadd.f32 %v865, %v918
        %924 = vset.pattern.permute.xlu0 2
        %925 = vperm.xlu0 %924, %v409
        %v926 = vpop.permute.xlu0 %925
        %928 = vset.pattern.permute.xlu0 2
        %929 = vperm.xlu0 %928, %v410
        %v930 = vpop.permute.xlu0 %929
        %v932 = vmul.f32 %v920, %v926
        %v933 = vmul.f32 %v921, %v926
        %v934 = vmul.f32 %v922, %v930
        %v935 = vmul.f32 %v923, %v930
        %936 = vset.pattern.permute.xlu0 3
        %937 = vperm.xlu0 %936, %v409
        %v938 = vpop.permute.xlu0 %937
        %940 = vset.pattern.permute.xlu0 3
        %941 = vperm.xlu0 %940, %v410
        %v942 = vpop.permute.xlu0 %941
        %v944 = vadd.f32 %v932, %v938
        %v945 = vadd.f32 %v933, %v938
        %v946 = vadd.f32 %v934, %v942
        %v947 = vadd.f32 %v935, %v942
        %v948 = vadd.f32 %v944, %v690
        %v949 = vadd.f32 %v945, %v691
        %v950 = vadd.f32 %v946, %v692
        %v951 = vadd.f32 %v947, %v693
        %v952 = vmax.f32 %v948, 0.0
        %v953 = vmax.f32 %v949, 0.0
        %v954 = vmax.f32 %v950, 0.0
        %v955 = vmax.f32 %v951, 0.0
        %956 = vst [vmem:[%s404] sm:$0xff] %v952
        %957 = vst [vmem:[%s404 + $0x8] sm:$0xff] %v953
        %958 = vst [vmem:[%s404 + $0x10] sm:$0xff] %v954
        %959 = vst [vmem:[%s404 + $0x18] sm:$0xff] %v955
        %s960 = sand.u32 %s206, 1
        %s961 = sand.u32 %s206, 1
        %s962 = smul.addr %s961, 32
        %s963 = scalar_lea.vmem [#allocation13], %s962
        // Predicated region
        $region81: #{_lambda_.1} parent=51 // pred_check
          %p964 = pneg %p216
        $region82: #{_lambda_.1} parent=51 // pred_check_branch
          %966 = sbr.rel (%p964) target = $region84
        $region83: #{_lambda_.1} parent=51 // pred_region
          %s967 = smul.u32 2, %s25
          %s968 = smul.addr %s967, 8
          %s969 = scalar_lea.vmem %s8, %s968
          // Predicated region
          $region85: #{_lambda_.1} parent=83 // pred_check
            _
          $region86: #{_lambda_.1} parent=83 // pred_check_branch
            %971 = sbr.rel (0) target = $region88
          $region87: #{_lambda_.1} parent=83 // pred_region
            // Predicated region
            $region89: #{_lambda_.1} parent=87 // pred_check
              _
            $region90: #{_lambda_.1} parent=87 // pred_check_branch
              %973 = sbr.rel (0) target = $region92
            $region91: #{_lambda_.1} parent=87 // pred_region
              loop: start=0, step=1, limit=1
              $region93: #{_lambda_.1} parent=91 // loop_pre_header
                _
              $region94: #{_lambda_.1} parent=91 // loop_header
                %s975 = sphi 0, %s979
                %p976 = scmp.ge.s32.totalorder %s975, 1
                %s980 = sphi %s963, %s963
                %s981 = sphi %s969, %s969
              $region95: #{_lambda_.1} parent=91 // loop_header_branch
                %978 = sbr.rel (%p976) target = $region99
              $region96: #{_lambda_.1} parent=91 // loop_body
                %v982 = vld [vmem:[%s980] sm:$0xff]
                %983 = vst [vmem:[%s981] sm:$0xff] %v982
                %v984 = vld [vmem:[%s980 + $0x8] sm:$0xff]
                %985 = vst [vmem:[%s981 + $0x8] sm:$0xff] %v984
                %v986 = vld [vmem:[%s980 + $0x10] sm:$0xff]
                %987 = vst [vmem:[%s981 + $0x20] sm:$0xff] %v986
                %v988 = vld [vmem:[%s980 + $0x18] sm:$0xff]
                %989 = vst [vmem:[%s981 + $0x28] sm:$0xff] %v988
              $region97: #{_lambda_.1} parent=91 // loop_footer
                %s979 = sadd.s32 1, %s975
              $region98: #{_lambda_.1} parent=91 // loop_footer_branch
                %974 = sbr.rel target = $region94
              $region99: #{_lambda_.1} parent=91 // loop_exit
                _
            $region92: #{_lambda_.1} parent=87 // pred_fallthru
              _
            // Predicated region
            $region100: #{_lambda_.1} parent=87 // pred_check
              _
            $region101: #{_lambda_.1} parent=87 // pred_check_branch
              %991 = sbr.rel target = $region103
            $region102: #{_lambda_.1} parent=87 // pred_region
              _
            $region103: #{_lambda_.1} parent=87 // pred_fallthru
              _
          $region88: #{_lambda_.1} parent=83 // pred_fallthru
            _
          %992 = vnop
        $region84: #{_lambda_.1} parent=51 // pred_fallthru
          _
      $region52: #{_lambda_.1} parent=5 // pred_fallthru
        _
      %p993 = scmp.le.s32.totalorder 2, %s20
      // Predicated region
      $region104: #{_lambda_.1} parent=5 // pred_check
        %p994 = pneg %p993
      $region105: #{_lambda_.1} parent=5 // pred_check_branch
        %996 = sbr.rel (%p994) target = $region107
      $region106: #{_lambda_.1} parent=5 // pred_region
        %s997 = ssub.s32 %s20, 2
        // Predicated region
        $region108: #{_lambda_.1} parent=106 // pred_check
          %p998 = pneg %p222
        $region109: #{_lambda_.1} parent=106 // pred_check_branch
          %1000 = sbr.rel (%p998) target = $region111
        $region110: #{_lambda_.1} parent=106 // pred_region
          %s1001 = sand.u32 %s207, 1
          %s1002 = sand.u32 %s207, 1
          %s1003 = smul.addr %s1002, 32
          %s1004 = scalar_lea.vmem [#allocation13], %s1003
        $region111: #{_lambda_.1} parent=106 // pred_fallthru
          _
      $region107: #{_lambda_.1} parent=5 // pred_fallthru
        _
    $region6: #{_lambda_.1} parent=1 // loop_footer
      %s24 = sadd.s32 1, %s20
    $region7: #{_lambda_.1} parent=1 // loop_footer_branch
      %19 = sbr.rel target = $region3
    $region8: #{_lambda_.1} parent=1 // loop_exit
      _
    %1005 = vsyncpa [#allocation3], 1
    %s1006 = scalar_lea.sflag [#allocation3], 1
    %1007 = vsyncpa %s1006, 1
    %1008 = vsyncpa [#allocation5], 1
    %1009 = vsyncpa [#allocation8], 1
    %1010 = vsyncpa [#allocation11], 1

</llo_original>
